<compile_context>
chip_gen: v7x
topology: tpu7x:2x2x1
jax: 0.10.0
libtpu: 0.0.40
codegen_flags: <defaults>
</compile_context>

<pallas_src>
import functools

import jax
import jax.numpy as jnp
import numpy as np
from jax.experimental import pallas as pl
from jax.experimental.pallas import tpu as pltpu

_NCORES = 2      # outer "parallel" grid axis (v7x megacore split; serial on v5e/v6e)
_LANES = 128     # params slab lane width (lane-dense)
_SUBLANES = 8    # f32 sublane tile


def _composed_loss_kernel(pred_ref, yobs_ref, nan_ref, params_ref,
                          out_ref, acc_ref, *, l1_regularization):
    c = pl.program_id(0)   # core split of the params reduction ("parallel")
    i = pl.program_id(1)   # param row-block reduction ("arbitrary", last axis)

    # ---- init this core's scalar accumulator ----
    @pl.when(i == 0)
    def _init():
        acc_ref[0] = jnp.float32(0.0)

    # ---- obs_error: computed exactly once (core 0, first step) ----
    # Row-wise squared norm replaces the old BxB Gram matmul (only the
    # diagonal was ever used): B*D VPU flops + one row reduce.
    @pl.when(jnp.logical_and(i == 0, c == 0))
    def _obs():
        diff = pred_ref[...] - yobs_ref[...]                    # (B, D)
        sq = jnp.sum(diff * diff, axis=1, keepdims=True)        # (B, 1)
        valid = jnp.where(jnp.isnan(nan_ref[...]), 0.0, 1.0)    # non-NaN mask
        lens = jnp.sum(valid, axis=1, keepdims=True)            # (B, 1)
        # exact division (B is small; approx reciprocal would cost accuracy)
        acc_ref[0] = acc_ref[0] + jnp.sum(sq / lens)

    # ---- L1 of this param block (zero padding is L1-neutral) ----
    acc_ref[0] = acc_ref[0] + jnp.float32(l1_regularization) * jnp.sum(
        jnp.abs(params_ref[...]))

    # ---- emit this core's partial as a lane-dense (8,128) block ----
    @pl.when(i == pl.num_programs(1) - 1)
    def _finalize():
        out_ref[...] = jnp.full((_SUBLANES, _LANES), acc_ref[0],
                                dtype=jnp.float32)


def pack_parameters(parameters, max_block_rows=4096):
    """Flatten + zero-pad all parameters into a lane-dense [rows, 128] slab.

    Call this once per parameter set (e.g. hoist it out of the training step /
    keep a persistent pre-padded buffer) so the concat/pad is not
    re-materialized on every loss evaluation.
    """
    flat = jnp.concatenate([jnp.ravel(p).astype(jnp.float32)
                            for p in parameters])
    n = int(flat.shape[0])
    rows_needed = max(1, -(-n // _LANES))
    block_rows = max(_SUBLANES,
                     min(int(max_block_rows),
                         -(-rows_needed // _SUBLANES) * _SUBLANES))
    nblocks = -(-rows_needed // block_rows)
    nblocks = -(-nblocks // _NCORES) * _NCORES     # even split across cores
    rows = nblocks * block_rows
    padded = jnp.zeros((rows * _LANES,), jnp.float32).at[:n].set(flat)
    return padded.reshape(rows, _LANES), block_rows


def composed_loss_packed(pred, y_obs, nan_array, params2d, block_rows,
                         l1_regularization=0.001):
    """Loss from a pre-packed params slab (see pack_parameters)."""
    B, D = pred.shape
    Bn, N = nan_array.shape
    rows, lanes = params2d.shape
    assert lanes == _LANES and rows % block_rows == 0
    nblocks = rows // block_rows
    assert nblocks % _NCORES == 0
    kp = nblocks // _NCORES     # param row-blocks per core

    kernel = functools.partial(_composed_loss_kernel,
                               l1_regularization=float(l1_regularization))

    out = pl.pallas_call(
        kernel,
        out_shape=jax.ShapeDtypeStruct((_NCORES * _SUBLANES, _LANES),
                                       jnp.float32),
        grid_spec=pltpu.PrefetchScalarGridSpec(
            num_scalar_prefetch=0,
            grid=(_NCORES, kp),
            in_specs=[
                # small batch-data blocks: resident across the whole grid
                pl.BlockSpec((B, D), lambda c, i: (0, 0)),
                pl.BlockSpec((B, D), lambda c, i: (0, 0)),
                pl.BlockSpec((Bn, N), lambda c, i: (0, 0)),
                # params slab: tiled + double-buffered along the reduction
                pl.BlockSpec((block_rows, _LANES),
                             lambda c, i: (c * kp + i, 0)),
            ],
            out_specs=pl.BlockSpec((_SUBLANES, _LANES), lambda c, i: (c, 0)),
            scratch_shapes=[pltpu.SMEM((1,), jnp.float32)],
        ),
        compiler_params=pltpu.CompilerParams(
            dimension_semantics=("parallel", "arbitrary")),
    )(
        pred.astype(jnp.float32),
        y_obs.astype(jnp.float32),
        nan_array.astype(jnp.float32),
        params2d,
    )
    # one partial per core, broadcast over its (8,128) block
    return jnp.sum(out[::_SUBLANES, 0])


def composed_loss(pred, y_obs, nan_array, parameters, l1_regularization=0.001,
                  max_block_rows=4096):
    """JAX wrapper mirroring composed_loss_function.forward."""
    params2d, block_rows = pack_parameters(parameters, max_block_rows)
    return composed_loss_packed(pred, y_obs, nan_array, params2d, block_rows,
                                l1_regularization)


if __name__ == "__main__":
    key = jax.random.PRNGKey(0)
    k_pred, k_obs, k_nan, k_mask, k_w1, k_b1, k_w2, k_b2 = jax.random.split(key, 8)

    B, D, N = 8, 16, 16  # batch, prediction dim, nan-mask width

    pred = jax.random.normal(k_pred, (B, D), dtype=jnp.float32)
    y_obs = jax.random.normal(k_obs, (B, D), dtype=jnp.float32)

    # nan_array: random values with ~30% NaNs; column 0 kept valid so lens > 0
    base = jax.random.normal(k_nan, (B, N), dtype=jnp.float32)
    nan_mask = jax.random.uniform(k_mask, (B, N)) < 0.3
    nan_mask = nan_mask.at[:, 0].set(False)
    nan_array = jnp.where(nan_mask, jnp.nan, base)

    # Synthetic "model parameters" (deterministic init; shapes are arbitrary)
    parameters = [
        jax.random.normal(k_w1, (32, 16), dtype=jnp.float32),
        jax.random.normal(k_b1, (32,), dtype=jnp.float32),
        jax.random.normal(k_w2, (16, 32), dtype=jnp.float32),
        jax.random.normal(k_b2, (16,), dtype=jnp.float32),
    ]

    l1_reg = 0.001
    loss = composed_loss(pred, y_obs, nan_array, parameters, l1_reg)
    loss = jax.block_until_ready(loss)

    # Pure numpy reference (mirrors the PyTorch forward exactly)
    pred_np = np.asarray(pred)
    y_np = np.asarray(y_obs)
    nan_np = np.asarray(nan_array)
    lens = np.sum(~np.isnan(nan_np), axis=1).astype(np.float32)
    diff = pred_np - y_np
    obs_error = np.trace((diff @ diff.T) / lens)
    l1_norm = sum(np.sum(np.abs(np.asarray(p))) for p in parameters)
    ref = obs_error + l1_reg * l1_norm

    np.testing.assert_allclose(np.asarray(loss), ref, rtol=1e-5, atol=1e-5)
    print("KERNEL_OK")
</pallas_src>

<mosaic_0001>
module attributes {stable_mosaic.version = 11 : i64} {
  func.func @_composed_loss_kernel(%arg0: i32, %arg1: i32, %arg2: memref<8x16xf32, #tpu.memory_space<vmem>>, %arg3: memref<8x16xf32, #tpu.memory_space<vmem>>, %arg4: memref<8x16xf32, #tpu.memory_space<vmem>>, %arg5: memref<16x128xf32, #tpu.memory_space<vmem>>, %arg6: memref<8x128xf32, #tpu.memory_space<vmem>>, %arg7: memref<1xf32, #tpu.memory_space<smem>>) attributes {dimension_semantics = [#tpu.dimension_semantics<parallel>, #tpu.dimension_semantics<arbitrary>], iteration_bounds = array<i64: 2, 1>, scalar_prefetch = 0 : i64, scratch_operands = 1 : i64, tpu.core_type = #tpu.core_type<tc>, window_params = [{pipeline_mode = #tpu.pipeline_mode<synchronous>, transform_indices = @transform_0, window_bounds = array<i64: 8, 16>}, {pipeline_mode = #tpu.pipeline_mode<synchronous>, transform_indices = @transform_1, window_bounds = array<i64: 8, 16>}, {pipeline_mode = #tpu.pipeline_mode<synchronous>, transform_indices = @transform_2, window_bounds = array<i64: 8, 16>}, {transform_indices = @transform_3, window_bounds = array<i64: 16, 128>}, {transform_indices = @transform_4, window_bounds = array<i64: 8, 128>}]} {
    %c0_i32 = arith.constant 0 : i32
    %0 = arith.cmpi eq, %arg1, %c0_i32 : i32
    %1 = arith.extui %0 : i1 to i32
    %c0_i32_0 = arith.constant 0 : i32
    %2 = arith.cmpi ne, %1, %c0_i32_0 : i32
    scf.if %2 {
      %cst_10 = arith.constant 0.000000e+00 : f32
      %c0_11 = arith.constant 0 : index
      %21 = memref.load %arg7[%c0_11] : memref<1xf32, #tpu.memory_space<smem>>
      memref.store %cst_10, %arg7[%c0_11] : memref<1xf32, #tpu.memory_space<smem>>
    } else {
    }
    %c0_i32_1 = arith.constant 0 : i32
    %3 = arith.cmpi eq, %arg1, %c0_i32_1 : i32
    %c0_i32_2 = arith.constant 0 : i32
    %4 = arith.cmpi eq, %arg0, %c0_i32_2 : i32
    %5 = arith.andi %3, %4 : i1
    %6 = arith.extui %5 : i1 to i32
    %c0_i32_3 = arith.constant 0 : i32
    %7 = arith.cmpi ne, %6, %c0_i32_3 : i32
    scf.if %7 {
      %c0_10 = arith.constant 0 : index
      %c0_11 = arith.constant 0 : index
      %21 = vector.load %arg2[%c0_10, %c0_11] : memref<8x16xf32, #tpu.memory_space<vmem>>, vector<8x16xf32>
      %c0_12 = arith.constant 0 : index
      %c0_13 = arith.constant 0 : index
      %22 = vector.load %arg3[%c0_12, %c0_13] : memref<8x16xf32, #tpu.memory_space<vmem>>, vector<8x16xf32>
      %23 = arith.subf %21, %22 : vector<8x16xf32>
      %24 = arith.mulf %23, %23 : vector<8x16xf32>
      %cst_14 = arith.constant dense<0.000000e+00> : vector<8xf32>
      %25 = vector.multi_reduction <add>, %24, %cst_14 [1] : vector<8x16xf32> to vector<8xf32>
      %26 = vector.shape_cast %25 : vector<8xf32> to vector<8x1xf32>
      %c0_15 = arith.constant 0 : index
      %c0_16 = arith.constant 0 : index
      %27 = vector.load %arg4[%c0_15, %c0_16] : memref<8x16xf32, #tpu.memory_space<vmem>>, vector<8x16xf32>
      %28 = arith.cmpf one, %27, %27 : vector<8x16xf32>
      %cst_17 = arith.constant 0.000000e+00 : f32
      %cst_18 = arith.constant 1.000000e+00 : f32
      %29 = vector.broadcast %cst_17 : f32 to vector<8x16xf32>
      %30 = vector.broadcast %cst_18 : f32 to vector<8x16xf32>
      %31 = arith.select %28, %29, %30 : vector<8x16xi1>, vector<8x16xf32>
      %cst_19 = arith.constant dense<0.000000e+00> : vector<8xf32>
      %32 = vector.multi_reduction <add>, %31, %cst_19 [1] : vector<8x16xf32> to vector<8xf32>
      %33 = vector.shape_cast %32 : vector<8xf32> to vector<8x1xf32>
      %c0_20 = arith.constant 0 : index
      %34 = memref.load %arg7[%c0_20] : memref<1xf32, #tpu.memory_space<smem>>
      %35 = arith.divf %26, %33 : vector<8x1xf32>
      %36 = vector.shape_cast %35 : vector<8x1xf32> to vector<1x8x1xf32>
      %cst_21 = arith.constant dense<0.000000e+00> : vector<1xf32>
      %37 = vector.multi_reduction <add>, %36, %cst_21 [1, 2] : vector<1x8x1xf32> to vector<1xf32>
      %38 = vector.shape_cast %37 : vector<1xf32> to vector<1x1x1xf32>
      %39 = vector.extract %38[0, 0, 0] : f32 from vector<1x1x1xf32>
      %40 = arith.addf %34, %39 : f32
      %c0_22 = arith.constant 0 : index
      %41 = memref.load %arg7[%c0_22] : memref<1xf32, #tpu.memory_space<smem>>
      memref.store %40, %arg7[%c0_22] : memref<1xf32, #tpu.memory_space<smem>>
    } else {
    }
    %c0 = arith.constant 0 : index
    %8 = memref.load %arg7[%c0] : memref<1xf32, #tpu.memory_space<smem>>
    %c0_4 = arith.constant 0 : index
    %c0_5 = arith.constant 0 : index
    %9 = vector.load %arg5[%c0_4, %c0_5] : memref<16x128xf32, #tpu.memory_space<vmem>>, vector<16x128xf32>
    %10 = math.absf %9 : vector<16x128xf32>
    %11 = vector.shape_cast %10 : vector<16x128xf32> to vector<1x16x128xf32>
    %cst = arith.constant dense<0.000000e+00> : vector<1xf32>
    %12 = vector.multi_reduction <add>, %11, %cst [1, 2] : vector<1x16x128xf32> to vector<1xf32>
    %13 = vector.shape_cast %12 : vector<1xf32> to vector<1x1x1xf32>
    %14 = vector.extract %13[0, 0, 0] : f32 from vector<1x1x1xf32>
    %cst_6 = arith.constant 1.000000e-03 : f32
    %15 = arith.mulf %cst_6, %14 : f32
    %16 = arith.addf %8, %15 : f32
    %c0_7 = arith.constant 0 : index
    %17 = memref.load %arg7[%c0_7] : memref<1xf32, #tpu.memory_space<smem>>
    memref.store %16, %arg7[%c0_7] : memref<1xf32, #tpu.memory_space<smem>>
    %c0_i32_8 = arith.constant 0 : i32
    %18 = arith.cmpi eq, %arg1, %c0_i32_8 : i32
    %19 = arith.extui %18 : i1 to i32
    %c0_i32_9 = arith.constant 0 : i32
    %20 = arith.cmpi ne, %19, %c0_i32_9 : i32
    scf.if %20 {
      %c0_10 = arith.constant 0 : index
      %21 = memref.load %arg7[%c0_10] : memref<1xf32, #tpu.memory_space<smem>>
      %22 = vector.broadcast %21 : f32 to vector<8x128xf32>
      %c0_11 = arith.constant 0 : index
      %c0_12 = arith.constant 0 : index
      %23 = vector.load %arg6[%c0_11, %c0_12] : memref<8x128xf32, #tpu.memory_space<vmem>>, vector<8x128xf32>
      tpu.vector_store %arg6[%c0_11, %c0_12], %22 {strides = array<i32>} : memref<8x128xf32, #tpu.memory_space<vmem>>, vector<8x128xf32>,
    } else {
    }
    return
  }
  func.func @transform_0(%arg0: i32, %arg1: i32) -> (i32, i32) {
    %c0_i32 = arith.constant 0 : i32
    %c0_i32_0 = arith.constant 0 : i32
    %c0_i32_1 = arith.constant 0 : i32
    return %c0_i32, %c0_i32_0 : i32, i32
  }
  func.func @transform_1(%arg0: i32, %arg1: i32) -> (i32, i32) {
    %c0_i32 = arith.constant 0 : i32
    %c0_i32_0 = arith.constant 0 : i32
    %c0_i32_1 = arith.constant 0 : i32
    return %c0_i32, %c0_i32_0 : i32, i32
  }
  func.func @transform_2(%arg0: i32, %arg1: i32) -> (i32, i32) {
    %c0_i32 = arith.constant 0 : i32
    %c0_i32_0 = arith.constant 0 : i32
    %c0_i32_1 = arith.constant 0 : i32
    return %c0_i32, %c0_i32_0 : i32, i32
  }
  func.func @transform_3(%arg0: i32, %arg1: i32) -> (i32, i32) {
    %c1_i32 = arith.constant 1 : i32
    %0 = arith.muli %arg0, %c1_i32 : i32
    %1 = arith.addi %0, %arg1 : i32
    %c0_i32 = arith.constant 0 : i32
    %c0_i32_0 = arith.constant 0 : i32
    return %1, %c0_i32 : i32, i32
  }
  func.func @transform_4(%arg0: i32, %arg1: i32) -> (i32, i32) {
    %c0_i32 = arith.constant 0 : i32
    %c0_i32_0 = arith.constant 0 : i32
    return %arg0, %c0_i32 : i32, i32
  }
}

</mosaic_0001>

<llo_original>
// kernel: tpu_custom_call.1
$region0: #{tpu_custom_call.1}
  #allocation0 [shape = 'u32[]', space=smem, size = 0x4, offset = 0x4, fixed_abs, tag = 'smem constant byte address 0x4 - core index']
  #allocation1 [shape = 'u32[144,128]{1,0:T(1,128)}', space=vmem, size = 0x12000, scoped, tag = 'internal scratch']
  #allocation2 [shape = 'f32[1]{0:T(128)}', space=smem, size = 0x200, scoped, tag = 'scratch operand']
  %s0 = inlined_call_operand.hbm [shape: f32[8,16], index: 0, kind: input, shape index: {}]
  %s1 = inlined_call_operand.hbm [shape: f32[8,16], index: 1, kind: input, shape index: {}]
  %s2 = inlined_call_operand.hbm [shape: f32[8,16], index: 2, kind: input, shape index: {}]
  %s3 = inlined_call_operand.hbm [shape: f32[32,128], index: 3, kind: input, shape index: {}]
  %s4 = inlined_call_operand.hbm [shape: f32[16,128], index: 4, kind: output, shape index: {}]
  %s5 = sld [smem:[#allocation0]]
  $region77: #{tpu_custom_call.1} parent=0
    _
  %s7 = ssub.s32 1, %s5
  %s8 = scalar_select 0, %s7, %s5
  $region1: #{tpu_custom_call.1} parent=0
    #allocation3 [shape = 'u8[4096]{0}', space=vmem, size = 0x1000, scoped, tag = 'input window, operand 0, single buffered']
    #allocation4 [shape = 's32[2]{0}', space=sflag, size = 0x8, scoped, tag = 'scoped memory for tpu_custom_call.1']
    #allocation5 [shape = 's32[2]{0}', space=sflag, size = 0x8, scoped, tag = 'scoped memory for tpu_custom_call.1']
    #allocation6 [shape = 'u8[4096]{0}', space=vmem, size = 0x1000, scoped, tag = 'input window, operand 1, single buffered']
    #allocation7 [shape = 's32[1]{0}', space=sflag, size = 0x4, scoped, tag = 'scoped memory for tpu_custom_call.1']
    #allocation8 [shape = 'u8[4096]{0}', space=vmem, size = 0x1000, scoped, tag = 'input window, operand 2, single buffered']
    #allocation9 [shape = 'u8[16384]{0}', space=vmem, size = 0x4000, scoped, tag = 'input window, operand 3']
    #allocation10 [shape = 's32[2]{0}', space=sflag, size = 0x8, scoped, tag = 'scoped memory for tpu_custom_call.1']
    #allocation11 [shape = 'u8[8192]{0}', space=vmem, size = 0x2000, scoped, tag = 'output window, operand 0']
    %9 = vsyncpa [#allocation4], 0
    %10 = vsyncpa [#allocation7], 0
    %11 = vsyncpa [#allocation10], 0
    %s12 = scalar_lea.sflag [#allocation10], 1
    %13 = vsyncpa %s12, 0
    %14 = vsyncpa [#allocation5], 0
    %s15 = scalar_lea.sflag [#allocation5], 1
    %16 = vsyncpa %s15, 0
    loop: start=0, step=1, limit=4
    $region2: #{tpu_custom_call.1} parent=1 // loop_pre_header
      _
    $region3: #{tpu_custom_call.1} parent=1 // loop_header
      %s18 = sphi 0, %s22
      %p19 = scmp.ge.s32.totalorder %s18, 4
      %s25 = sphi 0, %s37
      %s26 = sphi 0, %s33
      %s27 = sphi 0, %s25
      %s28 = sphi 0, %s26
      %s29 = sphi 0, %s27
      %s30 = sphi 0, %s28
      %s38 = sphi 0, %s38
      %s40 = sphi 0, %s38
      %s41 = sphi 0, %s40
      %s55 = sphi 0, %s41
      %s59 = sphi 0, %s59
      %s61 = sphi 0, %s59
      %s62 = sphi 0, %s61
      %s76 = sphi 0, %s62
      %s80 = sphi 0, %s80
      %s82 = sphi 0, %s80
      %s83 = sphi 0, %s82
      %s97 = sphi 0, %s83
      %s105 = sphi 0, %s107
      %s108 = sphi 0, %s105
      %s109 = sphi 0, %s108
      %s125 = sphi 0, %s109
      %s131 = sphi 0, %s133
      %s134 = sphi 0, %s131
      %s135 = sphi 0, %s134
      %s151 = sphi 0, %s135
    $region4: #{tpu_custom_call.1} parent=1 // loop_header_branch
      %21 = sbr.rel (%p19) target = $region8
    $region5: #{tpu_custom_call.1} parent=1 // loop_body
      %s23 = ssub.s32 %s18, 1
      %s24 = ssub.s32 %s18, 2
      %s31 = sadd.s32 1, %s26
      %p32 = scmp.ge.s32.totalorder %s31, 1
      %s33 = scalar_select %p32, 0, %s31
      %s34 = sadd.s32 1, %s25
      %s35 = scalar_select %p32, %s34, %s25
      %p36 = scmp.ge.s32.totalorder %s35, 2
      %s37 = scalar_select %p36, 0, %s35
      %s39 = sadd.s32 %s38, 1
      %p42 = scmp.eq.s32.totalorder %s18, 1
      %p43 = scmp.ne.s32.totalorder %s38, %s40
      %p44 = scmp.eq.s32.totalorder %s18, 0
      %p45 = por %p43, %p44
      %p46 = scmp.ne.s32.totalorder %s38, %s40
      %p47 = scmp.eq.s32.totalorder %s23, 1
      %p48 = por %p46, %p47
      %p49 = scmp.ne.s32.totalorder %s40, %s41
      %p50 = scmp.eq.s32.totalorder %s23, 0
      %p51 = por %p49, %p50
      %p52 = scmp.ne.s32.totalorder %s40, %s41
      %p53 = scmp.eq.s32.totalorder %s24, 1
      %p54 = por %p52, %p53
      %p56 = scmp.ne.s32.totalorder %s41, %s55
      %p57 = scmp.eq.s32.totalorder %s24, 0
      %p58 = por %p56, %p57
      %s60 = sadd.s32 %s59, 1
      %p63 = scmp.eq.s32.totalorder %s18, 1
      %p64 = scmp.ne.s32.totalorder %s59, %s61
      %p65 = scmp.eq.s32.totalorder %s18, 0
      %p66 = por %p64, %p65
      %p67 = scmp.ne.s32.totalorder %s59, %s61
      %p68 = scmp.eq.s32.totalorder %s23, 1
      %p69 = por %p67, %p68
      %p70 = scmp.ne.s32.totalorder %s61, %s62
      %p71 = scmp.eq.s32.totalorder %s23, 0
      %p72 = por %p70, %p71
      %p73 = scmp.ne.s32.totalorder %s61, %s62
      %p74 = scmp.eq.s32.totalorder %s24, 1
      %p75 = por %p73, %p74
      %p77 = scmp.ne.s32.totalorder %s62, %s76
      %p78 = scmp.eq.s32.totalorder %s24, 0
      %p79 = por %p77, %p78
      %s81 = sadd.s32 %s80, 1
      %p84 = scmp.eq.s32.totalorder %s18, 1
      %p85 = scmp.ne.s32.totalorder %s80, %s82
      %p86 = scmp.eq.s32.totalorder %s18, 0
      %p87 = por %p85, %p86
      %p88 = scmp.ne.s32.totalorder %s80, %s82
      %p89 = scmp.eq.s32.totalorder %s23, 1
      %p90 = por %p88, %p89
      %p91 = scmp.ne.s32.totalorder %s82, %s83
      %p92 = scmp.eq.s32.totalorder %s23, 0
      %p93 = por %p91, %p92
      %p94 = scmp.ne.s32.totalorder %s82, %s83
      %p95 = scmp.eq.s32.totalorder %s24, 1
      %p96 = por %p94, %p95
      %p98 = scmp.ne.s32.totalorder %s83, %s97
      %p99 = scmp.eq.s32.totalorder %s24, 0
      %p100 = por %p98, %p99
      %s101 = sadd.s32 %s25, %s26
      %s102 = sadd.s32 %s37, %s33
      %s103 = ssub.s32 %s101, %s102
      %p104 = scmp.eq.s32.totalorder %s103, 0
      %s106 = sadd.s32 %s105, 1
      %s107 = scalar_select %p104, %s105, %s106
      %p110 = pneg %p104
      %p111 = scmp.eq.s32.totalorder %s18, 1
      %p112 = por %p110, %p111
      %p113 = scmp.ne.s32.totalorder %s105, %s108
      %p114 = scmp.eq.s32.totalorder %s18, 0
      %p115 = por %p113, %p114
      %p116 = scmp.ne.s32.totalorder %s105, %s108
      %p117 = scmp.eq.s32.totalorder %s23, 1
      %p118 = por %p116, %p117
      %p119 = scmp.ne.s32.totalorder %s108, %s109
      %p120 = scmp.eq.s32.totalorder %s23, 0
      %p121 = por %p119, %p120
      %p122 = scmp.ne.s32.totalorder %s108, %s109
      %p123 = scmp.eq.s32.totalorder %s24, 1
      %p124 = por %p122, %p123
      %p126 = scmp.ne.s32.totalorder %s109, %s125
      %p127 = scmp.eq.s32.totalorder %s24, 0
      %p128 = por %p126, %p127
      %s129 = ssub.s32 %s25, %s37
      %p130 = scmp.eq.s32.totalorder %s129, 0
      %s132 = sadd.s32 %s131, 1
      %s133 = scalar_select %p130, %s131, %s132
      %p136 = pneg %p130
      %p137 = scmp.eq.s32.totalorder %s18, 1
      %p138 = por %p136, %p137
      %p139 = scmp.ne.s32.totalorder %s131, %s134
      %p140 = scmp.eq.s32.totalorder %s18, 0
      %p141 = por %p139, %p140
      %p142 = scmp.ne.s32.totalorder %s131, %s134
      %p143 = scmp.eq.s32.totalorder %s23, 1
      %p144 = por %p142, %p143
      %p145 = scmp.ne.s32.totalorder %s134, %s135
      %p146 = scmp.eq.s32.totalorder %s23, 0
      %p147 = por %p145, %p146
      %p148 = scmp.ne.s32.totalorder %s134, %s135
      %p149 = scmp.eq.s32.totalorder %s24, 1
      %p150 = por %p148, %p149
      %p152 = scmp.ne.s32.totalorder %s135, %s151
      %p153 = scmp.eq.s32.totalorder %s24, 0
      %p154 = por %p152, %p153
      %p155 = scmp.le.s32.totalorder 1, %s18
      %p156 = scmp.lt.s32.totalorder %s18, 3
      %p157 = pnand %p155, %p156
      %p158 = pneg %p157
      // Predicated region
      $region9: #{tpu_custom_call.1} parent=5 // pred_check
        _
      $region10: #{tpu_custom_call.1} parent=5 // pred_check_branch
        %160 = sbr.rel (%p157) target = $region12
      $region11: #{tpu_custom_call.1} parent=5 // pred_region
        %s161 = ssub.s32 %s18, 1
        // Predicated region
        $region13: #{tpu_custom_call.1} parent=11 // pred_check
          %p162 = pneg %p51
        $region14: #{tpu_custom_call.1} parent=11 // pred_check_branch
          %164 = sbr.rel (%p162) target = $region16
        $region15: #{tpu_custom_call.1} parent=11 // pred_region
          %s166 = ssub.s32 128, 128
          %167 = vsyncadd [#allocation4], %s166
          %s169 = sshll.u32 [#allocation3], 4
          %s170 = int_to_ptr.vmem [resolvable:$true] %s169
          %172 = dma.hbm_to_vmem [thread:$0]  %s0, 128, %s170, [#allocation4]
        $region16: #{tpu_custom_call.1} parent=11 // pred_fallthru
          _
        // Predicated region
        $region17: #{tpu_custom_call.1} parent=11 // pred_check
          %p173 = pneg %p72
        $region18: #{tpu_custom_call.1} parent=11 // pred_check_branch
          %175 = sbr.rel (%p173) target = $region20
        $region19: #{tpu_custom_call.1} parent=11 // pred_region
          %s177 = ssub.s32 128, 128
          %178 = vsyncadd [#allocation7], %s177
          %s180 = sshll.u32 [#allocation6], 4
          %s181 = int_to_ptr.vmem [resolvable:$true] %s180
          %183 = dma.hbm_to_vmem [thread:$0]  %s1, 128, %s181, [#allocation7]
        $region20: #{tpu_custom_call.1} parent=11 // pred_fallthru
          _
        // Predicated region
        $region21: #{tpu_custom_call.1} parent=11 // pred_check
          %p184 = pneg %p93
        $region22: #{tpu_custom_call.1} parent=11 // pred_check_branch
          %186 = sbr.rel (%p184) target = $region24
        $region23: #{tpu_custom_call.1} parent=11 // pred_region
          %s188 = ssub.s32 128, 128
          %189 = vsyncadd [#allocation7], %s188
          %s191 = sshll.u32 [#allocation8], 4
          %s192 = int_to_ptr.vmem [resolvable:$true] %s191
          %194 = dma.hbm_to_vmem [thread:$0]  %s2, 128, %s192, [#allocation7]
        $region24: #{tpu_custom_call.1} parent=11 // pred_fallthru
          _
      $region12: #{tpu_custom_call.1} parent=5 // pred_fallthru
        _
      %p195 = scmp.lt.s32.totalorder %s18, 2
      // Predicated region
      $region25: #{tpu_custom_call.1} parent=5 // pred_check
        %p196 = pneg %p195
      $region26: #{tpu_custom_call.1} parent=5 // pred_check_branch
        %198 = sbr.rel (%p196) target = $region28
      $region27: #{tpu_custom_call.1} parent=5 // pred_region
        // Predicated region
        $region29: #{tpu_custom_call.1} parent=27 // pred_check
          %p199 = pneg %p115
        $region30: #{tpu_custom_call.1} parent=27 // pred_check_branch
          %201 = sbr.rel (%p199) target = $region32
        $region31: #{tpu_custom_call.1} parent=27 // pred_region
          %s202 = sand.u32 %s105, 1
          %s203 = scalar_lea.sflag [#allocation10], %s202
          %s204 = sand.u32 %s105, 1
          %s205 = smul.addr %s204, 16
          %s206 = scalar_lea.vmem [#allocation9], %s205
          %s207 = sadd.s32 %s25, %s26
          %s208 = smul.u32 2, %s207
          %s210 = ssub.s32 256, 256
          %211 = vsyncadd %s203, %s210
          %s212 = smul.addr %s208, 128
          %s213 = scalar_lea.hbm %s3, %s212
          %s214 = sshll.u32 %s206, 4
          %s215 = int_to_ptr.vmem [resolvable:$true] %s214
          %220 = dma.hbm_to_vmem [thread:$0]  %s213, 256, %s215, %s203, 128, 128, 8
        $region32: #{tpu_custom_call.1} parent=27 // pred_fallthru
          _
      $region28: #{tpu_custom_call.1} parent=5 // pred_fallthru
        _
      %p221 = scmp.le.s32.totalorder 1, %s18
      %p222 = scmp.lt.s32.totalorder %s18, 3
      %p223 = pnand %p221, %p222
      %p224 = pneg %p223
      // Predicated region
      $region33: #{tpu_custom_call.1} parent=5 // pred_check
        _
      $region34: #{tpu_custom_call.1} parent=5 // pred_check_branch
        %226 = sbr.rel (%p223) target = $region36
      $region35: #{tpu_custom_call.1} parent=5 // pred_region
        %s227 = ssub.s32 %s18, 1
        // Predicated region
        $region37: #{tpu_custom_call.1} parent=35 // pred_check
          %p228 = pneg %p51
        $region38: #{tpu_custom_call.1} parent=35 // pred_check_branch
          %230 = sbr.rel (%p228) target = $region40
        $region39: #{tpu_custom_call.1} parent=35 // pred_region
          %231 = dma.done [#allocation4], 128
        $region40: #{tpu_custom_call.1} parent=35 // pred_fallthru
          _
        // Predicated region
        $region41: #{tpu_custom_call.1} parent=35 // pred_check
          %p232 = pneg %p72
        $region42: #{tpu_custom_call.1} parent=35 // pred_check_branch
          %234 = sbr.rel (%p232) target = $region44
        $region43: #{tpu_custom_call.1} parent=35 // pred_region
          %235 = dma.done [#allocation7], 128
        $region44: #{tpu_custom_call.1} parent=35 // pred_fallthru
          _
        // Predicated region
        $region45: #{tpu_custom_call.1} parent=35 // pred_check
          %p236 = pneg %p93
        $region46: #{tpu_custom_call.1} parent=35 // pred_check_branch
          %238 = sbr.rel (%p236) target = $region48
        $region47: #{tpu_custom_call.1} parent=35 // pred_region
          %239 = dma.done [#allocation7], 128
        $region48: #{tpu_custom_call.1} parent=35 // pred_fallthru
          _
        %s240 = sand.u32 %s108, 1
        %s241 = scalar_lea.sflag [#allocation10], %s240
        %s242 = sand.u32 %s108, 1
        %s243 = smul.addr %s242, 16
        %s244 = scalar_lea.vmem [#allocation9], %s243
        // Predicated region
        $region49: #{tpu_custom_call.1} parent=35 // pred_check
          %p245 = pneg %p121
        $region50: #{tpu_custom_call.1} parent=35 // pred_check_branch
          %247 = sbr.rel (%p245) target = $region52
        $region51: #{tpu_custom_call.1} parent=35 // pred_region
          %248 = dma.done %s241, 256
        $region52: #{tpu_custom_call.1} parent=35 // pred_fallthru
          _
        %p249 = pneg %p51
        %p250 = pneg %p48
        %p251 = pneg %p72
        %p252 = pneg %p69
        %p253 = pneg %p93
        %p254 = pneg %p90
        %s255 = sand.u32 %s108, 1
        %s256 = scalar_lea.sflag [#allocation10], %s255
        %s257 = sand.u32 %s108, 1
        %s258 = smul.addr %s257, 16
        %s259 = scalar_lea.vmem [#allocation9], %s258
        %p260 = pneg %p121
        %p261 = pneg %p118
        %p262 = pneg %p147
        %p263 = pneg %p144
        %s264 = sand.u32 %s134, 1
        %s265 = scalar_lea.sflag [#allocation5], %s264
        %s266 = sand.u32 %s134, 1
        %s267 = smul.addr %s266, 8
        %s268 = scalar_lea.vmem [#allocation11], %s267
        %s269 = sadd.s32 %s27, %s28
        %s270 = smul.u32 2, %s269
        %p271 = scmp.eq.s32.totalorder %s28, 0
        // Predicated region
        $region53: #{tpu_custom_call.1} parent=35 // pred_check
          %p272 = pneg %p271
        $region54: #{tpu_custom_call.1} parent=35 // pred_check_branch
          %274 = sbr.rel (%p272) target = $region56
        $region55: #{tpu_custom_call.1} parent=35 // pred_region
          %s275 = scalar_lea.smem [#allocation2], 0
          %276 = sst [smem:[%s275]] 0.0
        $region56: #{tpu_custom_call.1} parent=35 // pred_fallthru
          _
        %p277 = scmp.eq.s32.totalorder %s27, 0
        %p278 = pnand %p271, %p277
        %p279 = pneg %p278
        // Predicated region
        $region57: #{tpu_custom_call.1} parent=35 // pred_check
          _
        $region58: #{tpu_custom_call.1} parent=35 // pred_check_branch
          %281 = sbr.rel (%p278) target = $region60
        $region59: #{tpu_custom_call.1} parent=35 // pred_region
          %v282 = vld [vmem:[#allocation3] sm:$0xff]
          %v283 = vld [vmem:[#allocation6] sm:$0xff]
          %v284 = vsub.f32 %v282, %v283
          %v285 = vmul.f32 %v284, %v284
          %vm286 = vcmask 130048
          %v287 = vsel %vm286, %v285, 0.0
          %288 = vadd.xlane.f32.xlu0 %v287
          %v289 = vpop.xlane.xlu0 %288
          %v290 = vld [vmem:[#allocation8] sm:$0xff]
          %vm291 = vcmp.ne.f32.partialorder %v290, %v290
          %v292 = vsel %vm291, 0.0, 1.0
          %v293 = vsel %vm286, %v292, 0.0
          %294 = vadd.xlane.f32.xlu0 %v293
          %v295 = vpop.xlane.xlu0 %294
          %s296 = sld [smem:[#allocation2]]
          %v297 = vrcp.pop %v295
          %v298 = vmul.f32 %v289, %v297
          %vm299 = vcmask 7168
          %v300 = vsel %vm299, %v298, 0.0
          %301 = vadd.xlane.f32.xlu0 %v300
          %v302 = vpop.xlane.xlu0 %301
          %v303 = vrot.slane %v302, 4
          %v304 = vadd.f32 %v302, %v303
          %v305 = vrot.slane %v304, 2
          %v306 = vadd.f32 %v304, %v305
          %v307 = vrot.slane %v306, 1
          %v308 = vadd.f32 %v306, %v307
          %s309 = vtos %v308
          %s310 = sadd.f32 %s296, %s309
          %s311 = scalar_lea.smem [#allocation2], 0
          %312 = sst [smem:[%s311]] %s310
        $region60: #{tpu_custom_call.1} parent=35 // pred_fallthru
          _
        %s313 = sld [smem:[#allocation2]]
        %v314 = vld [vmem:[%s244] sm:$0xff]
        %v315 = vld [vmem:[%s244 + $0x8] sm:$0xff]
        %v316 = vand.u32 2147483647, %v314
        %v317 = vand.u32 2147483647, %v315
        %v318 = vadd.f32 %v316, %v317
        %319 = vadd.xlane.f32.xlu0 %v318
        %v320 = vpop.xlane.xlu0 %319
        %v321 = vrot.slane %v320, 4
        %v322 = vadd.f32 %v320, %v321
        %v323 = vrot.slane %v322, 2
        %v324 = vadd.f32 %v322, %v323
        %v325 = vrot.slane %v324, 1
        %v326 = vadd.f32 %v324, %v325
        %s327 = vtos %v326
        %s328 = smul.f32 %s327, 0.001
        %s329 = sadd.f32 %s313, %s328
        %s330 = scalar_lea.smem [#allocation2], 0
        %331 = sst [smem:[%s330]] %s329
        // Predicated region
        $region61: #{tpu_custom_call.1} parent=35 // pred_check
          %p332 = pneg %p271
        $region62: #{tpu_custom_call.1} parent=35 // pred_check_branch
          %334 = sbr.rel (%p332) target = $region64
        $region63: #{tpu_custom_call.1} parent=35 // pred_region
          %s335 = sld [smem:[#allocation2]]
          %v336 = vstv %s335
          %337 = vst [vmem:[%s268] sm:$0xff] %v336
        $region64: #{tpu_custom_call.1} parent=35 // pred_fallthru
          _
        %s338 = sand.u32 %s134, 1
        %s339 = scalar_lea.sflag [#allocation5], %s338
        %s340 = sand.u32 %s134, 1
        %s341 = smul.addr %s340, 8
        %s342 = scalar_lea.vmem [#allocation11], %s341
        // Predicated region
        $region65: #{tpu_custom_call.1} parent=35 // pred_check
          %p343 = pneg %p144
        $region66: #{tpu_custom_call.1} parent=35 // pred_check_branch
          %345 = sbr.rel (%p343) target = $region68
        $region67: #{tpu_custom_call.1} parent=35 // pred_region
          %s347 = ssub.s32 128, 128
          %348 = vsyncadd %s339, %s347
          %s349 = smul.addr %s27, 128
          %s350 = scalar_lea.hbm %s4, %s349
          %s352 = sshll.u32 %s342, 4
          %s353 = int_to_ptr.vmem [resolvable:$true] %s352
          %355 = dma.vmem_to_hbm [thread:$0]  %s353, 128, %s350, %s339
        $region68: #{tpu_custom_call.1} parent=35 // pred_fallthru
          _
      $region36: #{tpu_custom_call.1} parent=5 // pred_fallthru
        _
      %p356 = scmp.le.s32.totalorder 2, %s18
      // Predicated region
      $region69: #{tpu_custom_call.1} parent=5 // pred_check
        %p357 = pneg %p356
      $region70: #{tpu_custom_call.1} parent=5 // pred_check_branch
        %359 = sbr.rel (%p357) target = $region72
      $region71: #{tpu_custom_call.1} parent=5 // pred_region
        %s360 = ssub.s32 %s18, 2
        // Predicated region
        $region73: #{tpu_custom_call.1} parent=71 // pred_check
          %p361 = pneg %p150
        $region74: #{tpu_custom_call.1} parent=71 // pred_check_branch
          %363 = sbr.rel (%p361) target = $region76
        $region75: #{tpu_custom_call.1} parent=71 // pred_region
          %s364 = sand.u32 %s135, 1
          %s365 = scalar_lea.sflag [#allocation5], %s364
          %s366 = sand.u32 %s135, 1
          %s367 = smul.addr %s366, 8
          %s368 = scalar_lea.vmem [#allocation11], %s367
          %369 = dma.done %s365, 128
        $region76: #{tpu_custom_call.1} parent=71 // pred_fallthru
          _
      $region72: #{tpu_custom_call.1} parent=5 // pred_fallthru
        _
    $region6: #{tpu_custom_call.1} parent=1 // loop_footer
      %s22 = sadd.s32 1, %s18
    $region7: #{tpu_custom_call.1} parent=1 // loop_footer_branch
      %17 = sbr.rel target = $region3
    $region8: #{tpu_custom_call.1} parent=1 // loop_exit
      _
    %370 = vsyncpa [#allocation4], 1
    %s371 = scalar_lea.sflag [#allocation4], 1
    %372 = vsyncpa %s371, 1
    %373 = vsyncpa [#allocation7], 1
    %374 = vsyncpa [#allocation10], 1
    %s375 = scalar_lea.sflag [#allocation10], 1
    %376 = vsyncpa %s375, 1
    %377 = vsyncpa [#allocation5], 1
    %s378 = scalar_lea.sflag [#allocation5], 1
    %379 = vsyncpa %s378, 1

</llo_original>
